<compile_context>
chip_gen: v6e
topology: v6e:2x2x1
jax: 0.10.0
libtpu: 0.0.40
codegen_flags: <defaults>
</compile_context>

<pallas_src>
import functools
import math

import jax
import jax.numpy as jnp
from jax.experimental import pallas as pl
from jax.experimental.pallas import tpu as pltpu

_INV_SQRT2 = 1.0 / math.sqrt(2.0)
_MIB = 1024 * 1024


def _gelu_math(x):
    # exact GeLU: x * 0.5 * (1 + erf(x / sqrt(2)))
    return x * 0.5 * (1.0 + jax.lax.erf(x * _INV_SQRT2))


def _gelu_kernel(x_ref, o_ref):
    x = x_ref[...].astype(jnp.float32)
    o_ref[...] = _gelu_math(x).astype(o_ref.dtype)


def _sublane(dtype):
    return {4: 8, 2: 16, 1: 32}.get(jnp.dtype(dtype).itemsize, 8)


def _choose_lanes(n, min_rows):
    """Largest lane width C (multiple of 128) dividing n, preferring rows >= min_rows."""
    best = None
    for c in (4096, 2048, 1024, 512, 256, 128):
        if n % c == 0:
            if best is None:
                best = c
            if n // c >= min_rows:
                return c
    return best


@functools.lru_cache(maxsize=None)
def _hw_params():
    """Returns (num_tensorcores, target_tile_bytes, vmem_limit_bytes)."""
    kind = ""
    try:
        kind = jax.devices()[0].device_kind.lower()
    except Exception:  # pragma: no cover - defensive
        pass
    vmem_cap = None
    try:
        vmem_cap = int(pltpu.get_tpu_info().vmem_capacity_bytes)
    except Exception:  # pragma: no cover - defensive
        pass

    is_v7 = ("v7" in kind) or (vmem_cap is not None and vmem_cap <= 64 * _MIB)
    if is_v7:
        # 2 TCs/chip, only 64 MiB VMEM per TC: keep tiles <= 8 MiB, scoped 40 MiB.
        num_tc, target_tile, vmem_limit = 2, 8 * _MIB, 40 * _MIB
    else:
        # v5e/v6e: single TC, 128 MiB VMEM: big tiles, fewer grid steps.
        num_tc, target_tile, vmem_limit = 1, 16 * _MIB, 80 * _MIB
    if vmem_cap:
        vmem_limit = min(vmem_limit, (vmem_cap * 5) // 8)
    return num_tc, target_tile, vmem_limit


def gelu_pallas(x):
    """Exact (erf) GeLU, elementwise, any shape / float dtype."""
    orig_shape = x.shape
    dtype = x.dtype
    n = x.size
    if n == 0:
        return x

    itemsize = jnp.dtype(dtype).itemsize
    sub = _sublane(dtype)
    lanes = _choose_lanes(n, min_rows=sub)

    if lanes is None:
        # Ragged size (not a multiple of 128): run the 128-divisible prefix
        # through the fast Pallas path; handle the <128-element tail with
        # plain XLA gelu. Avoids the pad+slice full-array copies entirely.
        x_flat = jnp.ravel(x)
        n_main = (n // 128) * 128
        if n_main == 0:
            # Tiny array: a kernel launch would be pure overhead.
            return _gelu_math(x_flat.astype(jnp.float32)).astype(dtype).reshape(orig_shape)
        y_main = jnp.ravel(gelu_pallas(x_flat[:n_main]))
        tail = x_flat[n_main:]
        y_tail = _gelu_math(tail.astype(jnp.float32)).astype(dtype)
        return jnp.concatenate([y_main, y_tail]).reshape(orig_shape)

    rows = n // lanes
    x2d = jnp.reshape(x, (rows, lanes))  # free: contiguous reshape, no HBM pass

    num_tc, target_tile_bytes, vmem_limit = _hw_params()
    row_bytes = lanes * itemsize
    total_bytes = rows * row_bytes

    if rows <= sub:
        tr = rows  # full-extent block (allowed even if not a sublane multiple)
    else:
        # Budget-sized tile, multiple of the dtype sublane count.
        tr = max(sub, (target_tile_bytes // row_bytes) // sub * sub)
        if tr >= rows:
            tr = rows  # whole array in one block: no forced split on single-TC parts
        if num_tc >= 2 and total_bytes > 4 * _MIB:
            # v7x megacore: ensure >= ~3 blocks per TensorCore so each core's
            # software pipeline has DMA/compute overlap.
            desired_blocks = 3 * num_tc
            tr_cap = max(sub, (rows // desired_blocks) // sub * sub)
            tr = min(tr, tr_cap)

    grid = (pl.cdiv(rows, tr),)

    cost = pl.CostEstimate(
        flops=25 * n,          # lowered erf rational polynomial ~20-30 flops/elem
        transcendentals=n,
        bytes_accessed=2 * n * itemsize,
    )

    out2d = pl.pallas_call(
        _gelu_kernel,
        out_shape=jax.ShapeDtypeStruct((rows, lanes), dtype),
        grid_spec=pltpu.PrefetchScalarGridSpec(
            num_scalar_prefetch=0,
            grid=grid,
            in_specs=[pl.BlockSpec((tr, lanes), lambda i: (i, 0))],
            out_specs=pl.BlockSpec((tr, lanes), lambda i: (i, 0)),
        ),
        compiler_params=pltpu.CompilerParams(
            dimension_semantics=("parallel",),
            vmem_limit_bytes=vmem_limit,
        ),
        cost_estimate=cost,
    )(x2d)

    return out2d.reshape(orig_shape)


def gelu_ref(x):
    return x * 0.5 * (1.0 + jax.lax.erf(x / math.sqrt(2.0)))


if __name__ == "__main__":
    key = jax.random.PRNGKey(0)
    # Shape consistent with a typical NCHW activation: (batch=2, C=4, H=16, W=16)
    x = jax.random.normal(key, (2, 4, 16, 16), dtype=jnp.float32)

    y = gelu_pallas(x)
    jax.block_until_ready(y)

    y_ref = gelu_ref(x)
    assert y.shape == x.shape and y.dtype == x.dtype
    assert jnp.allclose(y, y_ref, atol=1e-6, rtol=1e-6)

    # Small ragged-shape check (exercises the prefix + XLA-tail path).
    x2 = jax.random.normal(key, (2, 300), dtype=jnp.float32)
    y2 = gelu_pallas(x2)
    jax.block_until_ready(y2)
    assert jnp.allclose(y2, gelu_ref(x2), atol=1e-6, rtol=1e-6)

    print("KERNEL_OK")
</pallas_src>

<mosaic_0001>
module attributes {stable_mosaic.version = 11 : i64} {
  func.func @_gelu_kernel(%arg0: i32, %arg1: memref<8x256xf32, #tpu.memory_space<vmem>>, %arg2: memref<8x256xf32, #tpu.memory_space<vmem>>) attributes {dimension_semantics = [#tpu.dimension_semantics<parallel>], iteration_bounds = array<i64: 1>, scalar_prefetch = 0 : i64, scratch_operands = 0 : i64, tpu.core_type = #tpu.core_type<tc>, window_params = [{transform_indices = @transform_0, window_bounds = array<i64: 8, 256>}, {transform_indices = @transform_1, window_bounds = array<i64: 8, 256>}]} {
    %c0 = arith.constant 0 : index
    %c0_0 = arith.constant 0 : index
    %0 = vector.load %arg1[%c0, %c0_0] : memref<8x256xf32, #tpu.memory_space<vmem>>, vector<8x256xf32>
    %cst = arith.constant 5.000000e-01 : f32
    %1 = vector.broadcast %cst : f32 to vector<8x256xf32>
    %2 = arith.mulf %0, %1 : vector<8x256xf32>
    %cst_1 = arith.constant 0.707106769 : f32
    %3 = vector.broadcast %cst_1 : f32 to vector<8x256xf32>
    %4 = arith.mulf %0, %3 : vector<8x256xf32>
    %5 = math.erf %4 : vector<8x256xf32>
    %cst_2 = arith.constant 1.000000e+00 : f32
    %6 = vector.broadcast %cst_2 : f32 to vector<8x256xf32>
    %7 = arith.addf %6, %5 : vector<8x256xf32>
    %8 = arith.mulf %2, %7 : vector<8x256xf32>
    %c0_3 = arith.constant 0 : index
    %c0_4 = arith.constant 0 : index
    %9 = vector.load %arg2[%c0_3, %c0_4] : memref<8x256xf32, #tpu.memory_space<vmem>>, vector<8x256xf32>
    tpu.vector_store %arg2[%c0_3, %c0_4], %8 {strides = array<i32>} : memref<8x256xf32, #tpu.memory_space<vmem>>, vector<8x256xf32>,
    return
  }
  func.func @transform_0(%arg0: i32) -> (i32, i32) {
    %c0_i32 = arith.constant 0 : i32
    %c0_i32_0 = arith.constant 0 : i32
    return %arg0, %c0_i32 : i32, i32
  }
  func.func @transform_1(%arg0: i32) -> (i32, i32) {
    %c0_i32 = arith.constant 0 : i32
    %c0_i32_0 = arith.constant 0 : i32
    return %arg0, %c0_i32 : i32, i32
  }
}

</mosaic_0001>

<llo_original>
// kernel: tpu_custom_call.1
$region0: #{tpu_custom_call.1}
  #allocation0 [shape = 'u32[]', space=smem, size = 0x4, offset = 0x4, fixed_abs, tag = 'smem constant byte address 0x4 - core index']
  #allocation1 [shape = 'u32[144,128]{1,0:T(1,128)}', space=vmem, size = 0x12000, scoped, tag = 'internal scratch']
  %s0 = inlined_call_operand.hbm [shape: f32[8,256], index: 0, kind: input, shape index: {}]
  %s1 = inlined_call_operand.hbm [shape: f32[8,256], index: 1, kind: output, shape index: {}]
  %s2 = sld [smem:[#allocation0]]
  $region18: #{tpu_custom_call.1} parent=0
    _
  %s4 = ssub.s32 1, %s2
  %s5 = scalar_select 0, %s4, %s2
  $region1: #{tpu_custom_call.1} parent=0
    #allocation2 [shape = 'u8[8192]{0}', space=vmem, size = 0x2000, scoped, tag = 'input window, operand 0, single buffered']
    #allocation3 [shape = 's32[1]{0}', space=sflag, size = 0x4, scoped, tag = 'scoped memory for tpu_custom_call.1']
    #allocation4 [shape = 's32[1]{0}', space=sflag, size = 0x4, scoped, tag = 'scoped memory for tpu_custom_call.1']
    #allocation5 [shape = 'u8[8192]{0}', space=vmem, size = 0x2000, scoped, tag = 'output window, operand 0, single buffered']
    %6 = vsyncpa [#allocation3], 0
    %7 = vsyncpa [#allocation4], 0
    // Predicated region
    $region2: #{tpu_custom_call.1} parent=1 // pred_check
      _
    $region3: #{tpu_custom_call.1} parent=1 // pred_check_branch
      %9 = sbr.rel (0) target = $region5
    $region4: #{tpu_custom_call.1} parent=1 // pred_region
      %s11 = ssub.s32 256, 256
      %12 = vsyncadd [#allocation3], %s11
      %s14 = sshll.u32 [#allocation2], 4
      %s15 = int_to_ptr.vmem [resolvable:$true] %s14
      %17 = dma.hbm_to_vmem [thread:$0]  %s0, 256, %s15, [#allocation3]
    $region5: #{tpu_custom_call.1} parent=1 // pred_fallthru
      _
    // Predicated region
    $region6: #{tpu_custom_call.1} parent=1 // pred_check
      _
    $region7: #{tpu_custom_call.1} parent=1 // pred_check_branch
      %19 = sbr.rel (0) target = $region9
    $region8: #{tpu_custom_call.1} parent=1 // pred_region
      %20 = dma.done [#allocation3], 256
    $region9: #{tpu_custom_call.1} parent=1 // pred_fallthru
      _
    %v21 = vld [vmem:[#allocation2] sm:$0xff]
    %v22 = vld [vmem:[#allocation2 + $0x8] sm:$0xff]
    %v23 = vmul.f32 %v21, 0.5
    %v24 = vmul.f32 %v22, 0.5
    %v25 = vmul.f32 %v21, 0.70710677
    %v26 = vmul.f32 %v22, 0.70710677
    %v27 = verf.f32.pop %v25
    %v28 = verf.f32.pop %v26
    %v29 = vadd.f32 %v27, 1.0
    %v30 = vadd.f32 %v28, 1.0
    %v31 = vmul.f32 %v23, %v29
    %v32 = vmul.f32 %v24, %v30
    %33 = vst [vmem:[#allocation5] sm:$0xff] %v31
    %34 = vst [vmem:[#allocation5 + $0x8] sm:$0xff] %v32
    // Predicated region
    $region10: #{tpu_custom_call.1} parent=1 // pred_check
      _
    $region11: #{tpu_custom_call.1} parent=1 // pred_check_branch
      %36 = sbr.rel (0) target = $region13
    $region12: #{tpu_custom_call.1} parent=1 // pred_region
      %s38 = ssub.s32 256, 256
      %39 = vsyncadd [#allocation4], %s38
      %s41 = sshll.u32 [#allocation5], 4
      %s42 = int_to_ptr.vmem [resolvable:$true] %s41
      %44 = dma.vmem_to_hbm [thread:$0]  %s42, 256, %s1, [#allocation4]
    $region13: #{tpu_custom_call.1} parent=1 // pred_fallthru
      _
    // Predicated region
    $region14: #{tpu_custom_call.1} parent=1 // pred_check
      _
    $region15: #{tpu_custom_call.1} parent=1 // pred_check_branch
      %46 = sbr.rel (0) target = $region17
    $region16: #{tpu_custom_call.1} parent=1 // pred_region
      %47 = dma.done [#allocation4], 256
    $region17: #{tpu_custom_call.1} parent=1 // pred_fallthru
      _
    %48 = vsyncpa [#allocation3], 1
    %49 = vsyncpa [#allocation4], 1

</llo_original>
